<compile_context>
chip_gen: v5e
topology: v5e:2x2
jax: 0.10.0
libtpu: 0.0.40
codegen_flags: <defaults>
</compile_context>

<pallas_src>
import functools
import math

import jax
import jax.numpy as jnp
from jax.experimental import pallas as pl
from jax.experimental.pallas import tpu as pltpu


_DEF_TARGET_BLOCK_BYTES = 2 << 20  # ~2 MiB/block: safe on v5e/v6e/v7x incl. band temporaries.


def _relpos_kernel(coef_ref, o_ref, *, max_rel: int, row_tile: int, col_tile: int):
    """Writes one (row_tile, col_tile*d_model) lane-dense output block.

    coef_ref rows (pre-tiled over col_tile columns in the wrapper):
      0: div_term[d] = exp(-2*(d//2)*ln(10000)/d_model)
      1: offset[d]   = P*div_term + (d%2)*pi/2   (folds '+P' and sin/cos parity)
      2: lo_row[d]   = encoding row for distance -P (fully clipped below)
      3: hi_row[d]   = encoding row for distance +P (fully clipped above)
      4: j_local     = (lane // d_model) as f32  (column index within the block)
    """
    TI, W = o_ref.shape
    i0 = pl.program_id(0) * row_tile
    j0 = pl.program_id(1) * col_tile

    # Distance range covered by this block.
    min_dist = j0 - (i0 + row_tile - 1)
    max_dist = (j0 + col_tile - 1) - i0

    # ---- fully clipped blocks: one broadcast + store, no math --------------
    @pl.when(min_dist >= max_rel)
    def _():
        hi = coef_ref[pl.ds(3, 1), :]                      # (1, W)
        o_ref[...] = jnp.broadcast_to(hi, (TI, W)).astype(o_ref.dtype)

    @pl.when(max_dist <= -max_rel)
    def _():
        lo = coef_ref[pl.ds(2, 1), :]                      # (1, W)
        o_ref[...] = jnp.broadcast_to(lo, (TI, W)).astype(o_ref.dtype)

    # ---- band blocks (some |j - i| < P): per-element sinusoid --------------
    @pl.when(jnp.logical_and(min_dist < max_rel, max_dist > -max_rel))
    def _():
        div_row = coef_ref[pl.ds(0, 1), :]                 # (1, W)
        off_row = coef_ref[pl.ds(1, 1), :]                 # (1, W)
        j_row = coef_ref[pl.ds(4, 1), :] + j0.astype(jnp.float32)   # (1, W)
        i_col = (jax.lax.broadcasted_iota(jnp.int32, (TI, 1), 0) + i0
                 ).astype(jnp.float32)                     # (TI, 1)
        dist = jnp.clip(j_row - i_col, -float(max_rel), float(max_rel))
        # cos(x) = sin(x + pi/2): parity already folded into off_row.
        o_ref[...] = jnp.sin(dist * div_row + off_row).astype(o_ref.dtype)


def _pick_tiles(L: int, D: int, itemsize: int, target_block_bytes: int):
    """(row_tile, col_tile) such that row_tile % 8 == 0 or == L, col_tile*D % 128 == 0
    or col_tile == L, both divide L, one block <= target when possible, and the
    grid has >= 2 blocks when legally possible (v7x has 2 TensorCores)."""
    lane_granule = 128 // math.gcd(128, D)

    col_cands = [L]
    c = lane_granule
    while c < L:
        if L % c == 0:
            col_cands.append(c)
        c += lane_granule
    col_cands = sorted(set(col_cands), reverse=True)

    row_cands = [L]
    r = 8
    while r < L:
        if L % r == 0:
            row_cands.append(r)
        r += 8
    row_cands = sorted(set(row_cands), reverse=True)

    def block_bytes(rt, ct):
        return rt * ct * D * itemsize

    # Widest column tile whose minimal-height block still fits the target.
    col_tile = col_cands[-1]
    for ct in col_cands:
        if block_bytes(min(8, L), ct) <= target_block_bytes:
            col_tile = ct
            break

    # Tallest row tile that keeps the block under the target.
    row_tile = row_cands[-1]
    for rt in row_cands:
        if block_bytes(rt, col_tile) <= target_block_bytes:
            row_tile = rt
            break

    # Megacore: guarantee >= 2 blocks when legally possible (prefer row split
    # to keep full lane width).
    if (L // row_tile) * (L // col_tile) == 1:
        row_splits = [rt for rt in row_cands if rt < L]
        col_splits = [ct for ct in col_cands if ct < L]
        if row_splits:
            row_tile = row_splits[0]
        elif col_splits:
            col_tile = col_splits[0]
    return row_tile, col_tile


def _coefficient_rows(D: int, P: int, col_tile: int):
    """(5, col_tile*D) f32 constant rows described in _relpos_kernel."""
    d = jnp.arange(D)
    k = (d // 2).astype(jnp.float32)
    div_term = jnp.exp(k * (-2.0 * math.log(10000.0) / float(D)))
    phase = (d % 2).astype(jnp.float32) * (0.5 * math.pi)
    offset = float(P) * div_term + phase
    lo_row = jnp.sin(phase)                                   # distance -P  (t = 0)
    hi_row = jnp.sin(2.0 * float(P) * div_term + phase)       # distance +P  (t = 2P)
    W = col_tile * D
    j_local = (jnp.arange(W) // D).astype(jnp.float32)
    return jnp.stack(
        [jnp.tile(div_term, col_tile),
         jnp.tile(offset, col_tile),
         jnp.tile(lo_row, col_tile),
         jnp.tile(hi_row, col_tile),
         j_local], axis=0).astype(jnp.float32)


def relative_positional_encoding(q, d_model: int, max_relative_position: int = 30, *,
                                 out_dtype=jnp.float32,
                                 target_block_bytes: int = _DEF_TARGET_BLOCK_BYTES,
                                 row_tile: int | None = None,
                                 col_tile: int | None = None):
    """JAX/Pallas equivalent of RelativePositionalEncoding(d_model, P).forward(q).

    Only q.shape[2] (the query length) is used, exactly as in the PyTorch
    module.  Returns (1, L, L, d_model) in `out_dtype` (float32 by default)."""
    L = int(q.shape[2])
    D = int(d_model)
    P = int(max_relative_position)
    itemsize = jnp.dtype(out_dtype).itemsize
    assert L * D < 2**31, "q_length * d_model must fit in int32"

    if row_tile is None or col_tile is None:
        rt, ct = _pick_tiles(L, D, itemsize, target_block_bytes)
        row_tile = rt if row_tile is None else int(row_tile)
        col_tile = ct if col_tile is None else int(col_tile)
    assert L % row_tile == 0 and L % col_tile == 0, "tiles must divide q_length"
    assert row_tile % 8 == 0 or row_tile == L
    assert (col_tile * D) % 128 == 0 or col_tile == L

    W = col_tile * D
    n_rb, n_cb = L // row_tile, L // col_tile
    coefs = _coefficient_rows(D, P, col_tile)

    kernel = functools.partial(_relpos_kernel, max_rel=P,
                               row_tile=row_tile, col_tile=col_tile)

    # VMEM budget: double-buffered output + double-buffered (tiny) coefs + a few
    # block-sized band-path temporaries.  Only ask for more than the default
    # scoped limit (16 MiB on v5e) when a caller forces large tiles.
    block_bytes = row_tile * W * itemsize
    coef_bytes = 5 * W * 4
    budget = 5 * block_bytes + 2 * coef_bytes
    cp_kwargs = dict(dimension_semantics=("parallel", "parallel"))
    if budget > (12 << 20):
        cp_kwargs["vmem_limit_bytes"] = budget + (4 << 20)
    compiler_params = pltpu.CompilerParams(**cp_kwargs)

    # Cost: only band blocks run the sin polynomial (~VALU flops, not EUP
    # transcendentals); the rest of the kernel is bytes-written.
    band_cb = min(n_cb, (row_tile + 2 * P + col_tile - 2) // col_tile + 1)
    band_elems = n_rb * band_cb * row_tile * col_tile * D
    cost = pl.CostEstimate(
        flops=18 * band_elems,
        transcendentals=0,
        bytes_accessed=L * L * D * itemsize + coef_bytes,
    )

    out = pl.pallas_call(
        kernel,
        out_shape=jax.ShapeDtypeStruct((L, L * D), out_dtype),
        grid=(n_rb, n_cb),
        in_specs=[pl.BlockSpec((5, W), lambda i, j: (0, 0))],
        out_specs=pl.BlockSpec((row_tile, W), lambda i, j: (i, j)),
        compiler_params=compiler_params,
        cost_estimate=cost,
    )(coefs)
    return out.reshape(1, L, L, D)


def _reference(L: int, d_model: int, P: int):
    """Pure-JAX replica of the PyTorch forward (table build + gather)."""
    rv = jnp.arange(L)
    dist = jnp.clip(rv[None, :] - rv[:, None], -P, P) + P
    positions = jnp.arange(2 * P + 1, dtype=jnp.float32)[:, None]
    div_term = jnp.exp(jnp.arange(0, d_model, 2, dtype=jnp.float32)
                       * -(math.log(10000.0) / d_model))
    enc = jnp.zeros((2 * P + 1, d_model), jnp.float32)
    enc = enc.at[:, 0::2].set(jnp.sin(positions * div_term))
    enc = enc.at[:, 1::2].set(jnp.cos(positions * div_term))
    return enc[dist][None]


if __name__ == "__main__":
    key = jax.random.PRNGKey(0)

    # q shaped like (batch, heads, seq, head_dim); the module only uses q.size(2).
    B, H, L, HD = 2, 4, 8, 32
    d_model = 32
    max_relative_position = 5        # small so clipping is exercised at L=8
    q = jax.random.normal(key, (B, H, L, HD), dtype=jnp.float32)

    out = relative_positional_encoding(q, d_model, max_relative_position)
    out = jax.block_until_ready(out)
    ref = _reference(L, d_model, max_relative_position)
    assert out.shape == (1, L, L, d_model), out.shape
    assert out.dtype == jnp.float32
    assert jnp.allclose(out, ref, atol=1e-5, rtol=1e-5), "mismatch vs reference (small)"

    # Second check at L=64 with explicit 8x8 blocks so the clipped-block
    # fast paths (broadcast-only) are exercised as well as the band path.
    L2 = 64
    q2 = jax.random.normal(key, (1, 1, L2, HD), dtype=jnp.float32)
    out2 = relative_positional_encoding(q2, d_model, max_relative_position,
                                        row_tile=8, col_tile=8)
    out2 = jax.block_until_ready(out2)
    ref2 = _reference(L2, d_model, max_relative_position)
    assert jnp.allclose(out2, ref2, atol=1e-5, rtol=1e-5), "mismatch vs reference (banded)"

    print("KERNEL_OK")
</pallas_src>

<mosaic_0001>
module attributes {stable_mosaic.version = 11 : i64} {
  func.func @_relpos_kernel(%arg0: i32, %arg1: i32, %arg2: memref<5x128xf32, #tpu.memory_space<vmem>>, %arg3: memref<8x128xf32, #tpu.memory_space<vmem>>) attributes {dimension_semantics = [#tpu.dimension_semantics<parallel>, #tpu.dimension_semantics<parallel>], iteration_bounds = array<i64: 1, 2>, scalar_prefetch = 0 : i64, scratch_operands = 0 : i64, tpu.core_type = #tpu.core_type<tc>, window_params = [{pipeline_mode = #tpu.pipeline_mode<synchronous>, transform_indices = @transform_0, window_bounds = array<i64: 5, 128>}, {transform_indices = @transform_1, window_bounds = array<i64: 8, 128>}]} {
    %c8_i32 = arith.constant 8 : i32
    %0 = arith.muli %arg0, %c8_i32 : i32
    %c4_i32 = arith.constant 4 : i32
    %1 = arith.muli %arg1, %c4_i32 : i32
    %c8_i32_0 = arith.constant 8 : i32
    %2 = arith.addi %0, %c8_i32_0 : i32
    %c1_i32 = arith.constant 1 : i32
    %3 = arith.subi %2, %c1_i32 : i32
    %4 = arith.subi %1, %3 : i32
    %c4_i32_1 = arith.constant 4 : i32
    %5 = arith.addi %1, %c4_i32_1 : i32
    %c1_i32_2 = arith.constant 1 : i32
    %6 = arith.subi %5, %c1_i32_2 : i32
    %7 = arith.subi %6, %0 : i32
    %c5_i32 = arith.constant 5 : i32
    %8 = arith.cmpi sge, %4, %c5_i32 : i32
    %9 = arith.extui %8 : i1 to i32
    %c0_i32 = arith.constant 0 : i32
    %10 = arith.cmpi ne, %9, %c0_i32 : i32
    scf.if %10 {
      %c3 = arith.constant 3 : index
      %c0 = arith.constant 0 : index
      %19 = vector.load %arg2[%c3, %c0] : memref<5x128xf32, #tpu.memory_space<vmem>>, vector<1x128xf32>
      %20 = vector.shape_cast %19 : vector<1x128xf32> to vector<1x128xf32>
      %21 = vector.broadcast %20 : vector<1x128xf32> to vector<8x128xf32>
      %c0_7 = arith.constant 0 : index
      %c0_8 = arith.constant 0 : index
      %22 = vector.load %arg3[%c0_7, %c0_8] : memref<8x128xf32, #tpu.memory_space<vmem>>, vector<8x128xf32>
      tpu.vector_store %arg3[%c0_7, %c0_8], %21 {strides = array<i32>} : memref<8x128xf32, #tpu.memory_space<vmem>>, vector<8x128xf32>,
    } else {
    }
    %c-5_i32 = arith.constant -5 : i32
    %11 = arith.cmpi sle, %7, %c-5_i32 : i32
    %12 = arith.extui %11 : i1 to i32
    %c0_i32_3 = arith.constant 0 : i32
    %13 = arith.cmpi ne, %12, %c0_i32_3 : i32
    scf.if %13 {
      %c2 = arith.constant 2 : index
      %c0 = arith.constant 0 : index
      %19 = vector.load %arg2[%c2, %c0] : memref<5x128xf32, #tpu.memory_space<vmem>>, vector<1x128xf32>
      %20 = vector.shape_cast %19 : vector<1x128xf32> to vector<1x128xf32>
      %21 = vector.broadcast %20 : vector<1x128xf32> to vector<8x128xf32>
      %c0_7 = arith.constant 0 : index
      %c0_8 = arith.constant 0 : index
      %22 = vector.load %arg3[%c0_7, %c0_8] : memref<8x128xf32, #tpu.memory_space<vmem>>, vector<8x128xf32>
      tpu.vector_store %arg3[%c0_7, %c0_8], %21 {strides = array<i32>} : memref<8x128xf32, #tpu.memory_space<vmem>>, vector<8x128xf32>,
    } else {
    }
    %c5_i32_4 = arith.constant 5 : i32
    %14 = arith.cmpi slt, %4, %c5_i32_4 : i32
    %c-5_i32_5 = arith.constant -5 : i32
    %15 = arith.cmpi sgt, %7, %c-5_i32_5 : i32
    %16 = arith.andi %14, %15 : i1
    %17 = arith.extui %16 : i1 to i32
    %c0_i32_6 = arith.constant 0 : i32
    %18 = arith.cmpi ne, %17, %c0_i32_6 : i32
    scf.if %18 {
      %c0 = arith.constant 0 : index
      %c0_7 = arith.constant 0 : index
      %19 = vector.load %arg2[%c0, %c0_7] : memref<5x128xf32, #tpu.memory_space<vmem>>, vector<1x128xf32>
      %c1 = arith.constant 1 : index
      %c0_8 = arith.constant 0 : index
      %20 = vector.load %arg2[%c1, %c0_8] : memref<5x128xf32, #tpu.memory_space<vmem>>, vector<1x128xf32>
      %c4 = arith.constant 4 : index
      %c0_9 = arith.constant 0 : index
      %21 = vector.load %arg2[%c4, %c0_9] : memref<5x128xf32, #tpu.memory_space<vmem>>, vector<1x128xf32>
      %22 = arith.sitofp %1 : i32 to f32
      %23 = vector.broadcast %22 : f32 to vector<1x128xf32>
      %24 = arith.addf %21, %23 : vector<1x128xf32>
      %25 = tpu.iota {dimensions = array<i32: 0>} : vector<8x1xi32>
      %26 = vector.broadcast %0 : i32 to vector<8x1xi32>
      %27 = arith.addi %25, %26 : vector<8x1xi32>
      %28 = arith.sitofp %27 : vector<8x1xi32> to vector<8x1xf32>
      %29 = vector.broadcast %24 : vector<1x128xf32> to vector<8x128xf32>
      %30 = vector.broadcast %28 : vector<8x1xf32> to vector<8x128xf32>
      %31 = arith.subf %29, %30 : vector<8x128xf32>
      %cst = arith.constant -5.000000e+00 : f32
      %cst_10 = arith.constant 5.000000e+00 : f32
      %32 = vector.broadcast %cst : f32 to vector<8x128xf32>
      %33 = arith.maximumf %32, %31 : vector<8x128xf32>
      %34 = vector.broadcast %cst_10 : f32 to vector<8x128xf32>
      %35 = arith.minimumf %34, %33 : vector<8x128xf32>
      %36 = vector.broadcast %19 : vector<1x128xf32> to vector<8x128xf32>
      %37 = arith.mulf %35, %36 : vector<8x128xf32>
      %38 = vector.broadcast %20 : vector<1x128xf32> to vector<8x128xf32>
      %39 = arith.addf %37, %38 : vector<8x128xf32>
      %40 = math.sin %39 : vector<8x128xf32>
      %c0_11 = arith.constant 0 : index
      %c0_12 = arith.constant 0 : index
      %41 = vector.load %arg3[%c0_11, %c0_12] : memref<8x128xf32, #tpu.memory_space<vmem>>, vector<8x128xf32>
      tpu.vector_store %arg3[%c0_11, %c0_12], %40 {strides = array<i32>} : memref<8x128xf32, #tpu.memory_space<vmem>>, vector<8x128xf32>,
    } else {
    }
    return
  }
  func.func @transform_0(%arg0: i32, %arg1: i32) -> (i32, i32) {
    %c0_i32 = arith.constant 0 : i32
    %c0_i32_0 = arith.constant 0 : i32
    %c0_i32_1 = arith.constant 0 : i32
    return %c0_i32, %c0_i32_0 : i32, i32
  }
  func.func @transform_1(%arg0: i32, %arg1: i32) -> (i32, i32) {
    %c0_i32 = arith.constant 0 : i32
    return %arg0, %arg1 : i32, i32
  }
}

</mosaic_0001>

<llo_original>
// kernel: tpu_custom_call.1
$region0: #{tpu_custom_call.1}
  #allocation0 [shape = 'u32[]', space=smem, size = 0x4, offset = 0x4, fixed_abs, tag = 'smem constant byte address 0x4 - core index']
  #allocation1 [shape = 'u32[72,128]{1,0:T(1,128)}', space=vmem, size = 0x9000, scoped, tag = 'internal scratch']
  %s0 = inlined_call_operand.hbm [shape: f32[5,128], index: 0, kind: input, shape index: {}]
  %s1 = inlined_call_operand.hbm [shape: f32[8,256], index: 1, kind: output, shape index: {}]
  %s2 = sld [smem:[#allocation0]]
  $region53: #{tpu_custom_call.1} parent=0
    _
  %s4 = ssub.s32 1, %s2
  %s5 = scalar_select 0, %s4, %s2
  $region1: #{tpu_custom_call.1} parent=0
    #allocation2 [shape = 'u8[4096]{0}', space=vmem, size = 0x1000, scoped, tag = 'input window, operand 0, single buffered']
    #allocation3 [shape = 's32[2]{0}', space=sflag, size = 0x8, scoped, tag = 'scoped memory for tpu_custom_call.1']
    #allocation4 [shape = 's32[2]{0}', space=sflag, size = 0x8, scoped, tag = 'scoped memory for tpu_custom_call.1']
    #allocation5 [shape = 'u8[8192]{0}', space=vmem, size = 0x2000, scoped, tag = 'output window, operand 0']
    %6 = vsyncpa [#allocation3], 0
    %7 = vsyncpa [#allocation4], 0
    %s8 = scalar_lea.sflag [#allocation4], 1
    %9 = vsyncpa %s8, 0
    loop: start=0, step=1, limit=4
    $region2: #{tpu_custom_call.1} parent=1 // loop_pre_header
      _
    $region3: #{tpu_custom_call.1} parent=1 // loop_header
      %s11 = sphi 0, %s15
      %p12 = scmp.ge.s32.totalorder %s11, 4
      %s18 = sphi 0, %s30
      %s19 = sphi 0, %s26
      %s20 = sphi 0, %s18
      %s21 = sphi 0, %s19
      %s22 = sphi 0, %s20
      %s23 = sphi 0, %s21
      %s31 = sphi 0, %s31
      %s33 = sphi 0, %s31
      %s34 = sphi 0, %s33
      %s48 = sphi 0, %s34
      %s56 = sphi 0, %s58
      %s59 = sphi 0, %s56
      %s60 = sphi 0, %s59
      %s76 = sphi 0, %s60
    $region4: #{tpu_custom_call.1} parent=1 // loop_header_branch
      %14 = sbr.rel (%p12) target = $region8
    $region5: #{tpu_custom_call.1} parent=1 // loop_body
      %s16 = ssub.s32 %s11, 1
      %s17 = ssub.s32 %s11, 2
      %s24 = sadd.s32 1, %s19
      %p25 = scmp.ge.s32.totalorder %s24, 2
      %s26 = scalar_select %p25, 0, %s24
      %s27 = sadd.s32 1, %s18
      %s28 = scalar_select %p25, %s27, %s18
      %p29 = scmp.ge.s32.totalorder %s28, 1
      %s30 = scalar_select %p29, 0, %s28
      %s32 = sadd.s32 %s31, 1
      %p35 = scmp.eq.s32.totalorder %s11, 1
      %p36 = scmp.ne.s32.totalorder %s31, %s33
      %p37 = scmp.eq.s32.totalorder %s11, 0
      %p38 = por %p36, %p37
      %p39 = scmp.ne.s32.totalorder %s31, %s33
      %p40 = scmp.eq.s32.totalorder %s16, 1
      %p41 = por %p39, %p40
      %p42 = scmp.ne.s32.totalorder %s33, %s34
      %p43 = scmp.eq.s32.totalorder %s16, 0
      %p44 = por %p42, %p43
      %p45 = scmp.ne.s32.totalorder %s33, %s34
      %p46 = scmp.eq.s32.totalorder %s17, 1
      %p47 = por %p45, %p46
      %p49 = scmp.ne.s32.totalorder %s34, %s48
      %p50 = scmp.eq.s32.totalorder %s17, 0
      %p51 = por %p49, %p50
      %s52 = ssub.s32 %s18, %s30
      %s53 = ssub.s32 %s19, %s26
      %s54 = sor.u32 %s52, %s53
      %p55 = scmp.eq.s32.totalorder %s54, 0
      %s57 = sadd.s32 %s56, 1
      %s58 = scalar_select %p55, %s56, %s57
      %p61 = pneg %p55
      %p62 = scmp.eq.s32.totalorder %s11, 1
      %p63 = por %p61, %p62
      %p64 = scmp.ne.s32.totalorder %s56, %s59
      %p65 = scmp.eq.s32.totalorder %s11, 0
      %p66 = por %p64, %p65
      %p67 = scmp.ne.s32.totalorder %s56, %s59
      %p68 = scmp.eq.s32.totalorder %s16, 1
      %p69 = por %p67, %p68
      %p70 = scmp.ne.s32.totalorder %s59, %s60
      %p71 = scmp.eq.s32.totalorder %s16, 0
      %p72 = por %p70, %p71
      %p73 = scmp.ne.s32.totalorder %s59, %s60
      %p74 = scmp.eq.s32.totalorder %s17, 1
      %p75 = por %p73, %p74
      %p77 = scmp.ne.s32.totalorder %s60, %s76
      %p78 = scmp.eq.s32.totalorder %s17, 0
      %p79 = por %p77, %p78
      %p80 = scmp.le.s32.totalorder 1, %s11
      %p81 = scmp.lt.s32.totalorder %s11, 3
      %p82 = pnand %p80, %p81
      %p83 = pneg %p82
      // Predicated region
      $region9: #{tpu_custom_call.1} parent=5 // pred_check
        _
      $region10: #{tpu_custom_call.1} parent=5 // pred_check_branch
        %85 = sbr.rel (%p82) target = $region12
      $region11: #{tpu_custom_call.1} parent=5 // pred_region
        %s86 = ssub.s32 %s11, 1
        // Predicated region
        $region13: #{tpu_custom_call.1} parent=11 // pred_check
          %p87 = pneg %p44
        $region14: #{tpu_custom_call.1} parent=11 // pred_check_branch
          %89 = sbr.rel (%p87) target = $region16
        $region15: #{tpu_custom_call.1} parent=11 // pred_region
          %91 = vsyncadd [#allocation3], 0
          %s93 = sshll.u32 %s0, 4
          %s94 = int_to_ptr.hbm [resolvable:$true] %s93
          %s95 = sshll.u32 [#allocation2], 4
          %s96 = int_to_ptr.vmem [resolvable:$true] %s95
          %98 = dma.hbm_to_vmem [thread:$0]  %s94, 128, %s96, [#allocation3]
        $region16: #{tpu_custom_call.1} parent=11 // pred_fallthru
          _
      $region12: #{tpu_custom_call.1} parent=5 // pred_fallthru
        _
      %p99 = scmp.lt.s32.totalorder %s11, 2
      // Predicated region
      $region17: #{tpu_custom_call.1} parent=5 // pred_check
        %p100 = pneg %p99
      $region18: #{tpu_custom_call.1} parent=5 // pred_check_branch
        %102 = sbr.rel (%p100) target = $region20
      $region19: #{tpu_custom_call.1} parent=5 // pred_region
        _
      $region20: #{tpu_custom_call.1} parent=5 // pred_fallthru
        _
      %p103 = scmp.le.s32.totalorder 1, %s11
      %p104 = scmp.lt.s32.totalorder %s11, 3
      %p105 = pnand %p103, %p104
      %p106 = pneg %p105
      // Predicated region
      $region21: #{tpu_custom_call.1} parent=5 // pred_check
        _
      $region22: #{tpu_custom_call.1} parent=5 // pred_check_branch
        %108 = sbr.rel (%p105) target = $region24
      $region23: #{tpu_custom_call.1} parent=5 // pred_region
        %s109 = ssub.s32 %s11, 1
        // Predicated region
        $region25: #{tpu_custom_call.1} parent=23 // pred_check
          %p110 = pneg %p44
        $region26: #{tpu_custom_call.1} parent=23 // pred_check_branch
          %112 = sbr.rel (%p110) target = $region28
        $region27: #{tpu_custom_call.1} parent=23 // pred_region
          %114 = dma.done [#allocation3], 128
        $region28: #{tpu_custom_call.1} parent=23 // pred_fallthru
          _
        %p115 = pneg %p44
        %p116 = pneg %p41
        %p117 = pneg %p72
        %p118 = pneg %p69
        %s119 = sand.u32 %s59, 1
        %s120 = scalar_lea.sflag [#allocation4], %s119
        %s121 = sand.u32 %s59, 1
        %s122 = smul.addr %s121, 8
        %s123 = scalar_lea.vmem [#allocation5], %s122
        %s124 = smul.u32 %s20, 8
        %s125 = smul.u32 %s21, 4
        %s126 = sadd.s32 %s124, 7
        %s127 = ssub.s32 %s125, %s126
        %s128 = sadd.s32 %s125, 3
        %s129 = ssub.s32 %s128, %s124
        %p130 = scmp.ge.s32.totalorder %s127, 5
        // Predicated region
        $region29: #{tpu_custom_call.1} parent=23 // pred_check
          %p131 = pneg %p130
        $region30: #{tpu_custom_call.1} parent=23 // pred_check_branch
          %133 = sbr.rel (%p131) target = $region32
        $region31: #{tpu_custom_call.1} parent=23 // pred_region
          %v134 = vld [vmem:[#allocation2 + $0x3] sm:$0x1]
          %v135 = vperm.slane %v134, 0
          %136 = vst [vmem:[%s123] sm:$0xff] %v135
        $region32: #{tpu_custom_call.1} parent=23 // pred_fallthru
          _
        %p137 = scmp.le.s32.totalorder %s129, 4294967291
        // Predicated region
        $region33: #{tpu_custom_call.1} parent=23 // pred_check
          %p138 = pneg %p137
        $region34: #{tpu_custom_call.1} parent=23 // pred_check_branch
          %140 = sbr.rel (%p138) target = $region36
        $region35: #{tpu_custom_call.1} parent=23 // pred_region
          %v141 = vld [vmem:[#allocation2 + $0x2] sm:$0x1]
          %v142 = vperm.slane %v141, 0
          %143 = vst [vmem:[%s123] sm:$0xff] %v142
        $region36: #{tpu_custom_call.1} parent=23 // pred_fallthru
          _
        %p144 = scmp.lt.s32.totalorder %s127, 5
        %p145 = scmp.gt.s32.totalorder %s129, 4294967291
        %p146 = pnand %p144, %p145
        %p147 = pneg %p146
        // Predicated region
        $region37: #{tpu_custom_call.1} parent=23 // pred_check
          _
        $region38: #{tpu_custom_call.1} parent=23 // pred_check_branch
          %149 = sbr.rel (%p146) target = $region40
        $region39: #{tpu_custom_call.1} parent=23 // pred_region
          %v150 = vld [vmem:[#allocation2] sm:$0x1]
          %v151 = vld [vmem:[#allocation2 + $0x1] sm:$0x1]
          %v152 = vld [vmem:[#allocation2 + $0x4] sm:$0x1]
          %s153 = scvt.s32.f32 %s125
          %v154 = vstv %s153
          %v155 = vadd.f32 %v152, %v154
          %v156 = vlaneseq
          %v157 = vshrl.u32 %v156, 7
          %v158 = vstv %s124
          %v159 = vadd.s32 %v157, %v158
          %v160 = vcvt.s32.f32 %v159
          %v161 = vperm.slane %v155, 0
          %v162 = vsub.f32 %v161, %v160
          %v163 = vmax.f32 %v162, -5.0
          %v164 = vmin.f32 %v163, 5.0
          %v165 = vperm.slane %v150, 0
          %v166 = vmul.f32 %v164, %v165
          %v167 = vperm.slane %v151, 0
          %v168 = vadd.f32 %v166, %v167
          %v169 = vand.u32 2147483647, %v168
          %vm170 = vcmp.le.f32.partialorder %v169, 0.7853982
          %vm171 = vcmp.lt.s32.totalorder %v168, 0
          %v172 = vand.u32 %v168, 2139095040
          %v173 = vshrl.u32 %v172, 23
          %v174 = vsub.s32 %v173, 127
          %v175 = vand.u32 2147483647, %v168
          %v176 = vand.u32 %v175, 8388607
          %v177 = vor.u32 %v176, 8388608
          %v178 = vsub.s32 0, %v177
          %v179 = vadd.s32 %v174, 1
          %vm180 = vcmp.gt.s32.totalorder %v179, 0
          %v181 = vsel %vm180, %v179, 0
          %v182 = vshrl.u32 %v181, 5
          %v183 = vand.u32 %v181, 31
          %v184 = vsub.s32 32, %v183
          %v185 = vshrl.u32 683565275, %v184
          %v186 = vshll.u32 683565275, %v183
          %v187 = vshrl.u32 2475754826, %v184
          %v188 = vor.u32 %v186, %v187
          %v189 = vshll.u32 2475754826, %v183
          %v190 = vshrl.u32 2131351028, %v184
          %v191 = vor.u32 %v189, %v190
          %v192 = vshll.u32 2131351028, %v183
          %v193 = vshrl.u32 2102212464, %v184
          %v194 = vor.u32 %v192, %v193
          %v195 = vshll.u32 2102212464, %v183
          %v196 = vshrl.u32 920167782, %v184
          %v197 = vor.u32 %v195, %v196
          %v198 = vshll.u32 920167782, %v183
          %v199 = vshrl.u32 1326507024, %v184
          %v200 = vor.u32 %v198, %v199
          %vm201 = vcmp.lt.s32.totalorder %v182, 1
          %vm202 = vcmp.lt.s32.totalorder %v182, 2
          %vm203 = vcmp.lt.s32.totalorder %v182, 3
          %vm204 = vcmp.lt.s32.totalorder %v182, 4
          %v205 = vsel %vm201, %v185, %v188
          %v206 = vsel %vm204, %v194, 2102212464
          %v207 = vsel %vm203, %v191, %v206
          %v208 = vsel %vm202, %v205, %v207
          %v209 = vsel %vm201, %v188, %v191
          %v210 = vsel %vm204, %v197, 920167782
          %v211 = vsel %vm203, %v194, %v210
          %v212 = vsel %vm202, %v209, %v211
          %v213 = vsel %vm201, %v191, %v194
          %v214 = vsel %vm204, %v200, 1326507024
          %v215 = vsel %vm203, %v197, %v214
          %v216 = vsel %vm202, %v213, %v215
          %v217 = vshll.u32 %v177, 8
          %v218 = vand.u32 %v217, 65535
          %v219 = vshrl.u32 %v217, 16
          %v220 = vand.u32 %v216, 65535
          %v221 = vshrl.u32 %v216, 16
          %v222 = vmul.u32 %v218, %v220
          %v223 = vmul.u32 %v218, %v221
          %v224 = vmul.u32 %v219, %v220
          %v225 = vmul.u32 %v219, %v221
          %v226 = vshll.u32 %v223, 16
          %v227 = vshrl.u32 %v223, 16
          %v228 = vshll.u32 %v224, 16
          %v229 = vshrl.u32 %v224, 16
          %vm230 = vc.u32 %v222, %v226
          %v231 = vsel %vm230, 1, 0
          %v232 = vadd.s32 %v222, %v226
          %v233 = vadd.s32 %v225, %v231
          %vm234 = vc.u32 %v232, %v228
          %v235 = vsel %vm234, 1, 0
          %v236 = vadd.s32 %v232, %v228
          %v237 = vadd.s32 %v233, %v235
          %v238 = vadd.s32 %v237, %v227
          %v239 = vadd.s32 %v238, %v229
          %v240 = vand.u32 %v217, 65535
          %v241 = vshrl.u32 %v217, 16
          %v242 = vand.u32 %v212, 65535
          %v243 = vshrl.u32 %v212, 16
          %v244 = vmul.u32 %v240, %v242
          %v245 = vmul.u32 %v240, %v243
          %v246 = vmul.u32 %v241, %v242
          %v247 = vmul.u32 %v241, %v243
          %v248 = vshll.u32 %v245, 16
          %v249 = vshrl.u32 %v245, 16
          %v250 = vshll.u32 %v246, 16
          %v251 = vshrl.u32 %v246, 16
          %vm252 = vc.u32 %v244, %v248
          %v253 = vsel %vm252, 1, 0
          %v254 = vadd.s32 %v244, %v248
          %v255 = vadd.s32 %v247, %v253
          %vm256 = vc.u32 %v254, %v250
          %v257 = vsel %vm256, 1, 0
          %v258 = vadd.s32 %v254, %v250
          %v259 = vadd.s32 %v255, %v257
          %v260 = vadd.s32 %v259, %v249
          %v261 = vadd.s32 %v260, %v251
          %v262 = vmul.u32 %v217, %v208
          %v263 = vadd.s32 %v239, %v258
          %vm264 = vc.u32 %v239, %v258
          %v265 = vadd.s32 %v261, 1
          %v266 = vsel %vm264, %v265, %v261
          %v267 = vadd.s32 %v262, %v266
          %v268 = vadd.s32 %v267, 536870912
          %v269 = vshrl.u32 %v268, 30
          %v270 = vshll.u32 %v269, 30
          %v271 = vsub.s32 %v267, %v270
          %vm272 = vcmp.lt.s32.totalorder %v271, 0
          %v273 = vsub.s32 0, %v271
          %v274 = vsel %vm272, %v273, %v271
          %v275 = vclz %v274
          %v276 = vsub.s32 %v275, 2
          %vm277 = vcmp.gt.s32.totalorder 0, %v276
          %v278 = vsel %vm277, 0, %v276
          %v279 = vsub.s32 32, %v278
          %v280 = vshll.u32 %v271, %v278
          %v281 = vshrl.u32 %v263, %v279
          %v282 = vor.u32 %v280, %v281
          %v283 = vsub.s32 4294967266, %v278
          %v284 = vadd.s32 %v283, 127
          %v285 = vshll.u32 %v284, 23
          %v286 = vor.u32 4788187, %v285
          %v287 = vand.u32 2147483647, %v286
          %v289 = vcvt.s32.f32 %v282
          %v290 = vmul.f32 %v289, %v287
          %v291 = vxor.u32 %v290, 2147483648
          %v292 = vsel %vm171, %v291, %v290
          %v293 = vsub.s32 4, %v269
          %v294 = vsel %vm171, %v293, %v269
          %v295 = vsel %vm170, %v168, %v292
          %v296 = vsel %vm170, 0, %v294
          %v297 = vmul.f32 %v295, %v295
          %v298 = vmul.f32 %v297, -0.001358992
          %v299 = vadd.f32 %v298, 0.041655596
          %v300 = vmul.f32 %v297, %v299
          %v301 = vadd.f32 %v300, -0.4999988
          %v302 = vmul.f32 %v297, %v301
          %v303 = vadd.f32 1.0, %v302
          %v304 = vmul.f32 %v295, %v295
          %v305 = vmul.f32 %v304, -0.00019511016
          %v306 = vadd.f32 %v305, 0.008332121
          %v307 = vmul.f32 %v304, %v306
          %v308 = vadd.f32 %v307, -0.16666654
          %v309 = vmul.f32 %v304, %v308
          %v310 = vadd.f32 %v309, 1.0
          %v311 = vmul.f32 %v310, %v295
          %vm312 = vweird.f32 %v168
          %v313 = vadd.s32 %v296, 3
          %v314 = vand.u32 %v313, 3
          %vm315 = vcmp.lt.s32.totalorder %v314, 2
          %vm316 = vcmp.eq.s32.totalorder %v314, 0
          %v317 = vxor.u32 %v311, 2147483648
          %v318 = vsel %vm316, %v303, %v317
          %vm319 = vcmp.eq.s32.totalorder %v314, 2
          %v320 = vxor.u32 %v303, 2147483648
          %v321 = vsel %vm319, %v320, %v311
          %v322 = vsel %vm315, %v318, %v321
          %v323 = vsel %vm312, nan, %v322
          %324 = vst [vmem:[%s123] sm:$0xff] %v323
        $region40: #{tpu_custom_call.1} parent=23 // pred_fallthru
          _
        %s325 = sand.u32 %s59, 1
        %s326 = scalar_lea.sflag [#allocation4], %s325
        %s327 = sand.u32 %s59, 1
        %s328 = smul.addr %s327, 8
        %s329 = scalar_lea.vmem [#allocation5], %s328
        // Predicated region
        $region41: #{tpu_custom_call.1} parent=23 // pred_check
          %p330 = pneg %p69
        $region42: #{tpu_custom_call.1} parent=23 // pred_check_branch
          %332 = sbr.rel (%p330) target = $region44
        $region43: #{tpu_custom_call.1} parent=23 // pred_region
          %334 = vsyncadd %s326, 0
          %s335 = smul.addr %s20, 2
          %s336 = sadd.s32 %s21, %s335
          %s337 = smul.addr %s336, 8
          %s338 = scalar_lea.hbm %s1, %s337
          %s340 = sshll.u32 %s329, 4
          %s341 = int_to_ptr.vmem [resolvable:$true] %s340
          %s342 = sshll.u32 %s338, 4
          %s343 = int_to_ptr.hbm [resolvable:$true] %s342
          %345 = dma.vmem_to_hbm [thread:$0]  %s341, 128, %s343, %s326
        $region44: #{tpu_custom_call.1} parent=23 // pred_fallthru
          _
      $region24: #{tpu_custom_call.1} parent=5 // pred_fallthru
        _
      %p346 = scmp.le.s32.totalorder 2, %s11
      // Predicated region
      $region45: #{tpu_custom_call.1} parent=5 // pred_check
        %p347 = pneg %p346
      $region46: #{tpu_custom_call.1} parent=5 // pred_check_branch
        %349 = sbr.rel (%p347) target = $region48
      $region47: #{tpu_custom_call.1} parent=5 // pred_region
        %s350 = ssub.s32 %s11, 2
        // Predicated region
        $region49: #{tpu_custom_call.1} parent=47 // pred_check
          %p351 = pneg %p75
        $region50: #{tpu_custom_call.1} parent=47 // pred_check_branch
          %353 = sbr.rel (%p351) target = $region52
        $region51: #{tpu_custom_call.1} parent=47 // pred_region
          %s354 = sand.u32 %s60, 1
          %s355 = scalar_lea.sflag [#allocation4], %s354
          %s356 = sand.u32 %s60, 1
          %s357 = smul.addr %s356, 8
          %s358 = scalar_lea.vmem [#allocation5], %s357
          %360 = dma.done %s355, 128
        $region52: #{tpu_custom_call.1} parent=47 // pred_fallthru
          _
      $region48: #{tpu_custom_call.1} parent=5 // pred_fallthru
        _
    $region6: #{tpu_custom_call.1} parent=1 // loop_footer
      %s15 = sadd.s32 1, %s11
    $region7: #{tpu_custom_call.1} parent=1 // loop_footer_branch
      %10 = sbr.rel target = $region3
    $region8: #{tpu_custom_call.1} parent=1 // loop_exit
      _
    %361 = vsyncpa [#allocation3], 1
    %s362 = scalar_lea.sflag [#allocation3], 1
    %363 = vsyncpa %s362, 1
    %364 = vsyncpa [#allocation4], 1
    %s365 = scalar_lea.sflag [#allocation4], 1
    %366 = vsyncpa %s365, 1

</llo_original>
